<compile_context>
chip_gen: v7x
topology: tpu7x:2x2x1
jax: 0.10.0
libtpu: 0.0.40
codegen_flags: <defaults>
</compile_context>

<pallas_src>
import jax
import jax.numpy as jnp
from jax.experimental import pallas as pl
from jax.experimental.pallas import tpu as pltpu


def re_forward_kernel(emb_ref, attn_ref, ent_ref, w1_ref, b1_ref, w2_ref, b2_ref,
                      out_ref):
    emb = emb_ref[...]          # (Bt, S, H) f32
    am = attn_ref[...]          # (Bt, S)    f32 in {0,1}
    em = ent_ref[...]           # (Bt, S)    f32 in {0,1,2}
    H = emb.shape[2]

    head_m = jnp.where(jnp.abs(em - 1.0) < 0.5, am, 0.0)   # (Bt, S)
    tail_m = jnp.where(jnp.abs(em - 2.0) < 0.5, am, 0.0)   # (Bt, S)

    def mean_pool(m):
        # VPU multiply + sublane reduce; emb block read once from VMEM.
        num = jnp.sum(emb * m[:, :, None], axis=1)                      # (Bt, H)
        den = jnp.maximum(jnp.sum(m, axis=1, keepdims=True), 1.0)       # (Bt, 1)
        return num / den        # exact divide, folded on the small (H) side

    sent = mean_pool(am)
    head = mean_pool(head_m)
    tail = mean_pool(tail_m)

    # Classifier layer 1: K=3H matmul expressed as three accumulating K=H dots
    # against static, sublane-aligned row-blocks of w1 (no concat / reshape).
    hdn = (jnp.dot(sent, w1_ref[0:H, :], preferred_element_type=jnp.float32)
           + jnp.dot(head, w1_ref[H:2 * H, :], preferred_element_type=jnp.float32)
           + jnp.dot(tail, w1_ref[2 * H:3 * H, :], preferred_element_type=jnp.float32)
           + b1_ref[...])
    hdn = jnp.maximum(hdn, 0.0)                                          # ReLU
    # Dropouts are identity in eval mode.
    out_ref[...] = (jnp.dot(hdn, w2_ref[...], preferred_element_type=jnp.float32)
                    + b2_ref[...])


def _vmem_budget_bytes():
    """Per-generation VMEM budget: ~3/4 of physical, capped at 100 MiB."""
    cap = 64 * 1024 * 1024                     # conservative fallback (v7x-sized)
    try:
        info = pltpu.get_tpu_info()
        cap = int(getattr(info, "vmem_capacity_bytes", cap))
    except Exception:
        pass
    return min(cap * 3 // 4, 100 * 1024 * 1024)   # ~96 MiB v5e/v6e, ~48 MiB v7x


def _pick_b_tile(B, S, H, R_pad, budget_bytes):
    """Largest sublane-aligned batch tile fitting the VMEM budget."""
    # Resident weight/bias blocks; default pipelining still double-buffers them.
    resident = 2 * (3 * H * 512 + 512 + 512 * R_pad + R_pad) * 4
    # Per batch row: double-buffered emb/mask/out blocks + in-kernel temporaries.
    per_row = (2 * (S * H + 2 * S + R_pad) + S * H + 3 * H + 2 * 512) * 4
    avail = max(budget_bytes - resident, per_row * 8)
    bt = min(avail // per_row, 512)            # per-step gains plateau past ~512
    bt = max(8, (bt // 8) * 8)                 # sublane-aligned tile
    if B <= bt:
        # Whole batch fits; split in two when cleanly possible so the
        # "parallel" grid axis can occupy both v7x TensorCores.
        if B >= 16 and B % 16 == 0 and B // 2 <= bt:
            return B // 2
        return B                               # full-dim block (no padding)
    return bt                                  # ragged tail handled by Pallas


def multilabel_re_forward(emb, attn_mask, entity_mask, w1, b1, w2, b2):
    B, S, H = emb.shape
    assert H % 8 == 0, "encoder hidden size must be sublane-aligned"
    R = w2.shape[1]

    # Lane-dense output: pad relation dim (and w2/b2 -- tiny) to a mult of 128.
    R_pad = ((R + 127) // 128) * 128
    if R_pad != R:
        w2 = jnp.pad(w2, ((0, 0), (0, R_pad - R)))
        b2 = jnp.pad(b2, ((0, 0), (0, R_pad - R)))
    # NOTE: emb / masks are NOT padded -- no extra HBM copy of the big tensor.

    budget = _vmem_budget_bytes()
    b_tile = _pick_b_tile(B, S, H, R_pad, budget)
    grid = (pl.cdiv(B, b_tile),)

    out = pl.pallas_call(
        re_forward_kernel,
        out_shape=jax.ShapeDtypeStruct((B, R_pad), jnp.float32),
        grid_spec=pltpu.PrefetchScalarGridSpec(
            num_scalar_prefetch=0,
            grid=grid,
            in_specs=[
                # pipelined per-batch-tile inputs
                pl.BlockSpec((b_tile, S, H), lambda i: (i, 0, 0)),
                pl.BlockSpec((b_tile, S), lambda i: (i, 0)),
                pl.BlockSpec((b_tile, S), lambda i: (i, 0)),
                # weights / biases resident across the whole grid
                pl.BlockSpec((3 * H, 512), lambda i: (0, 0)),
                pl.BlockSpec((1, 512), lambda i: (0, 0)),
                pl.BlockSpec((512, R_pad), lambda i: (0, 0)),
                pl.BlockSpec((1, R_pad), lambda i: (0, 0)),
            ],
            out_specs=pl.BlockSpec((b_tile, R_pad), lambda i: (i, 0)),
        ),
        compiler_params=pltpu.CompilerParams(
            dimension_semantics=("parallel",),
            vmem_limit_bytes=budget,
        ),
    )(emb, attn_mask, entity_mask, w1, b1, w2, b2)
    return out[:, :R]


def reference_forward(emb, attn_mask, entity_mask, w1, b1, w2, b2):
    """Pure-JAX reference for correctness checking."""
    am3 = attn_mask[:, :, None]
    sent = jnp.sum(emb * am3, axis=1) / jnp.maximum(
        jnp.sum(attn_mask, axis=1, keepdims=True), 1.0)
    head_m = (entity_mask == 1.0).astype(jnp.float32) * attn_mask
    tail_m = (entity_mask == 2.0).astype(jnp.float32) * attn_mask
    head = jnp.sum(emb * head_m[:, :, None], axis=1) / jnp.maximum(
        jnp.sum(head_m, axis=1, keepdims=True), 1.0)
    tail = jnp.sum(emb * tail_m[:, :, None], axis=1) / jnp.maximum(
        jnp.sum(tail_m, axis=1, keepdims=True), 1.0)
    combined = jnp.concatenate([sent, head, tail], axis=1)
    h = jnp.maximum(combined @ w1 + b1, 0.0)
    return h @ w2 + b2


if __name__ == "__main__":
    B, S, H, R = 2, 8, 32, 16           # batch, seq, encoder hidden, num_relations
    VOCAB = 100

    key = jax.random.PRNGKey(0)
    k_emb, k_ids, k_w1, k_b1, k_w2, k_b2 = jax.random.split(key, 6)

    # Deterministic "encoder" parameters: an embedding table.
    emb_table = jax.random.normal(k_emb, (VOCAB, H), jnp.float32) * 0.1

    # Inputs
    input_ids = jax.random.randint(k_ids, (B, S), 0, VOCAB)
    attention_mask = jnp.concatenate(
        [jnp.ones((B, 6), jnp.float32), jnp.zeros((B, 2), jnp.float32)], axis=1)
    entity_mask = jnp.zeros((B, S), jnp.float32)
    entity_mask = entity_mask.at[:, 1].set(1.0)   # head entity token
    entity_mask = entity_mask.at[:, 3].set(2.0)   # tail entity token

    # Classifier parameters: Linear(3H, 512) -> ReLU -> Linear(512, R)
    w1 = jax.random.normal(k_w1, (3 * H, 512), jnp.float32) * 0.02
    b1 = jax.random.normal(k_b1, (1, 512), jnp.float32) * 0.02
    w2 = jax.random.normal(k_w2, (512, R), jnp.float32) * 0.02
    b2 = jax.random.normal(k_b2, (1, R), jnp.float32) * 0.02

    # Glue: embedding lookup stays in plain JAX (the real encoder is a
    # transformer; stubbed here).
    emb = emb_table[input_ids]                    # (B, S, H)

    logits = multilabel_re_forward(emb, attention_mask, entity_mask,
                                   w1, b1, w2, b2)
    logits = jax.block_until_ready(logits)

    ref = reference_forward(emb, attention_mask, entity_mask, w1, b1, w2, b2)
    assert logits.shape == (B, R)
    assert jnp.allclose(logits, ref, atol=1e-4, rtol=1e-4), "mismatch vs reference"

    # predict() semantics (sigmoid + threshold) done outside the kernel.
    probs = jax.nn.sigmoid(logits)
    pred_labels = (probs > 0.5).astype(jnp.float32)
    jax.block_until_ready((pred_labels, probs))

    print("KERNEL_OK")
</pallas_src>

<mosaic_0001>
module attributes {stable_mosaic.version = 11 : i64} {
  func.func @re_forward_kernel(%arg0: i32, %arg1: memref<2x8x32xf32, #tpu.memory_space<vmem>>, %arg2: memref<2x8xf32, #tpu.memory_space<vmem>>, %arg3: memref<2x8xf32, #tpu.memory_space<vmem>>, %arg4: memref<96x512xf32, #tpu.memory_space<vmem>>, %arg5: memref<1x512xf32, #tpu.memory_space<vmem>>, %arg6: memref<512x128xf32, #tpu.memory_space<vmem>>, %arg7: memref<1x128xf32, #tpu.memory_space<vmem>>, %arg8: memref<2x128xf32, #tpu.memory_space<vmem>>) attributes {dimension_semantics = [#tpu.dimension_semantics<parallel>], iteration_bounds = array<i64: 1>, scalar_prefetch = 0 : i64, scratch_operands = 0 : i64, tpu.core_type = #tpu.core_type<tc>, window_params = [{transform_indices = @transform_0, window_bounds = array<i64: 2, 8, 32>}, {transform_indices = @transform_1, window_bounds = array<i64: 2, 8>}, {transform_indices = @transform_2, window_bounds = array<i64: 2, 8>}, {pipeline_mode = #tpu.pipeline_mode<synchronous>, transform_indices = @transform_3, window_bounds = array<i64: 96, 512>}, {pipeline_mode = #tpu.pipeline_mode<synchronous>, transform_indices = @transform_4, window_bounds = array<i64: 1, 512>}, {pipeline_mode = #tpu.pipeline_mode<synchronous>, transform_indices = @transform_5, window_bounds = array<i64: 512, 128>}, {pipeline_mode = #tpu.pipeline_mode<synchronous>, transform_indices = @transform_6, window_bounds = array<i64: 1, 128>}, {transform_indices = @transform_7, window_bounds = array<i64: 2, 128>}]} {
    %c0 = arith.constant 0 : index
    %c0_0 = arith.constant 0 : index
    %c0_1 = arith.constant 0 : index
    %0 = vector.load %arg1[%c0, %c0_0, %c0_1] : memref<2x8x32xf32, #tpu.memory_space<vmem>>, vector<2x8x32xf32>
    %c0_2 = arith.constant 0 : index
    %c0_3 = arith.constant 0 : index
    %1 = vector.load %arg2[%c0_2, %c0_3] : memref<2x8xf32, #tpu.memory_space<vmem>>, vector<2x8xf32>
    %c0_4 = arith.constant 0 : index
    %c0_5 = arith.constant 0 : index
    %2 = vector.load %arg3[%c0_4, %c0_5] : memref<2x8xf32, #tpu.memory_space<vmem>>, vector<2x8xf32>
    %cst = arith.constant 1.000000e+00 : f32
    %3 = vector.broadcast %cst : f32 to vector<2x8xf32>
    %4 = arith.subf %2, %3 : vector<2x8xf32>
    %5 = math.absf %4 : vector<2x8xf32>
    %cst_6 = arith.constant 5.000000e-01 : f32
    %6 = vector.broadcast %cst_6 : f32 to vector<2x8xf32>
    %7 = arith.cmpf olt, %5, %6 : vector<2x8xf32>
    %cst_7 = arith.constant 0.000000e+00 : f32
    %8 = vector.broadcast %cst_7 : f32 to vector<2x8xf32>
    %9 = arith.select %7, %1, %8 : vector<2x8xi1>, vector<2x8xf32>
    %cst_8 = arith.constant 2.000000e+00 : f32
    %10 = vector.broadcast %cst_8 : f32 to vector<2x8xf32>
    %11 = arith.subf %2, %10 : vector<2x8xf32>
    %12 = math.absf %11 : vector<2x8xf32>
    %cst_9 = arith.constant 5.000000e-01 : f32
    %13 = vector.broadcast %cst_9 : f32 to vector<2x8xf32>
    %14 = arith.cmpf olt, %12, %13 : vector<2x8xf32>
    %cst_10 = arith.constant 0.000000e+00 : f32
    %15 = vector.broadcast %cst_10 : f32 to vector<2x8xf32>
    %16 = arith.select %14, %1, %15 : vector<2x8xi1>, vector<2x8xf32>
    %17 = vector.shape_cast %1 : vector<2x8xf32> to vector<2x8x1xf32>
    %18 = vector.broadcast %17 : vector<2x8x1xf32> to vector<2x8x32xf32>
    %19 = arith.mulf %0, %18 : vector<2x8x32xf32>
    %cst_11 = arith.constant dense<0.000000e+00> : vector<2x32xf32>
    %20 = vector.multi_reduction <add>, %19, %cst_11 [1] : vector<2x8x32xf32> to vector<2x32xf32>
    %cst_12 = arith.constant dense<0.000000e+00> : vector<2xf32>
    %21 = vector.multi_reduction <add>, %1, %cst_12 [1] : vector<2x8xf32> to vector<2xf32>
    %22 = vector.shape_cast %21 : vector<2xf32> to vector<2x1xf32>
    %cst_13 = arith.constant 1.000000e+00 : f32
    %23 = vector.broadcast %cst_13 : f32 to vector<2x1xf32>
    %24 = arith.maximumf %22, %23 : vector<2x1xf32>
    %25 = vector.broadcast %24 : vector<2x1xf32> to vector<2x32xf32>
    %26 = arith.divf %20, %25 : vector<2x32xf32>
    %27 = vector.shape_cast %9 : vector<2x8xf32> to vector<2x8x1xf32>
    %28 = vector.broadcast %27 : vector<2x8x1xf32> to vector<2x8x32xf32>
    %29 = arith.mulf %0, %28 : vector<2x8x32xf32>
    %cst_14 = arith.constant dense<0.000000e+00> : vector<2x32xf32>
    %30 = vector.multi_reduction <add>, %29, %cst_14 [1] : vector<2x8x32xf32> to vector<2x32xf32>
    %cst_15 = arith.constant dense<0.000000e+00> : vector<2xf32>
    %31 = vector.multi_reduction <add>, %9, %cst_15 [1] : vector<2x8xf32> to vector<2xf32>
    %32 = vector.shape_cast %31 : vector<2xf32> to vector<2x1xf32>
    %cst_16 = arith.constant 1.000000e+00 : f32
    %33 = vector.broadcast %cst_16 : f32 to vector<2x1xf32>
    %34 = arith.maximumf %32, %33 : vector<2x1xf32>
    %35 = vector.broadcast %34 : vector<2x1xf32> to vector<2x32xf32>
    %36 = arith.divf %30, %35 : vector<2x32xf32>
    %37 = vector.shape_cast %16 : vector<2x8xf32> to vector<2x8x1xf32>
    %38 = vector.broadcast %37 : vector<2x8x1xf32> to vector<2x8x32xf32>
    %39 = arith.mulf %0, %38 : vector<2x8x32xf32>
    %cst_17 = arith.constant dense<0.000000e+00> : vector<2x32xf32>
    %40 = vector.multi_reduction <add>, %39, %cst_17 [1] : vector<2x8x32xf32> to vector<2x32xf32>
    %cst_18 = arith.constant dense<0.000000e+00> : vector<2xf32>
    %41 = vector.multi_reduction <add>, %16, %cst_18 [1] : vector<2x8xf32> to vector<2xf32>
    %42 = vector.shape_cast %41 : vector<2xf32> to vector<2x1xf32>
    %cst_19 = arith.constant 1.000000e+00 : f32
    %43 = vector.broadcast %cst_19 : f32 to vector<2x1xf32>
    %44 = arith.maximumf %42, %43 : vector<2x1xf32>
    %45 = vector.broadcast %44 : vector<2x1xf32> to vector<2x32xf32>
    %46 = arith.divf %40, %45 : vector<2x32xf32>
    %c0_20 = arith.constant 0 : index
    %c0_21 = arith.constant 0 : index
    %47 = vector.load %arg4[%c0_20, %c0_21] : memref<96x512xf32, #tpu.memory_space<vmem>>, vector<32x512xf32>
    %cst_22 = arith.constant dense<0.000000e+00> : vector<2x512xf32>
    %48 = tpu.matmul %26, %47, %cst_22 {dimension_numbers = #tpu.dot_dimension_numbers<[1], [0], [0], [1], [0, 0, 1, 1], [], []>} : vector<2x32xf32>, vector<32x512xf32>, vector<2x512xf32> -> vector<2x512xf32>
    %c32 = arith.constant 32 : index
    %c0_23 = arith.constant 0 : index
    %49 = vector.load %arg4[%c32, %c0_23] : memref<96x512xf32, #tpu.memory_space<vmem>>, vector<32x512xf32>
    %cst_24 = arith.constant dense<0.000000e+00> : vector<2x512xf32>
    %50 = tpu.matmul %36, %49, %cst_24 {dimension_numbers = #tpu.dot_dimension_numbers<[1], [0], [0], [1], [0, 0, 1, 1], [], []>} : vector<2x32xf32>, vector<32x512xf32>, vector<2x512xf32> -> vector<2x512xf32>
    %51 = arith.addf %48, %50 : vector<2x512xf32>
    %c64 = arith.constant 64 : index
    %c0_25 = arith.constant 0 : index
    %52 = vector.load %arg4[%c64, %c0_25] : memref<96x512xf32, #tpu.memory_space<vmem>>, vector<32x512xf32>
    %cst_26 = arith.constant dense<0.000000e+00> : vector<2x512xf32>
    %53 = tpu.matmul %46, %52, %cst_26 {dimension_numbers = #tpu.dot_dimension_numbers<[1], [0], [0], [1], [0, 0, 1, 1], [], []>} : vector<2x32xf32>, vector<32x512xf32>, vector<2x512xf32> -> vector<2x512xf32>
    %54 = arith.addf %51, %53 : vector<2x512xf32>
    %c0_27 = arith.constant 0 : index
    %c0_28 = arith.constant 0 : index
    %55 = vector.load %arg5[%c0_27, %c0_28] : memref<1x512xf32, #tpu.memory_space<vmem>>, vector<1x512xf32>
    %56 = vector.broadcast %55 : vector<1x512xf32> to vector<2x512xf32>
    %57 = arith.addf %54, %56 : vector<2x512xf32>
    %cst_29 = arith.constant 0.000000e+00 : f32
    %58 = vector.broadcast %cst_29 : f32 to vector<2x512xf32>
    %59 = arith.maximumf %57, %58 : vector<2x512xf32>
    %c0_30 = arith.constant 0 : index
    %c0_31 = arith.constant 0 : index
    %60 = vector.load %arg6[%c0_30, %c0_31] : memref<512x128xf32, #tpu.memory_space<vmem>>, vector<512x128xf32>
    %cst_32 = arith.constant dense<0.000000e+00> : vector<2x128xf32>
    %61 = tpu.matmul %59, %60, %cst_32 {dimension_numbers = #tpu.dot_dimension_numbers<[1], [0], [0], [1], [0, 0, 1, 1], [], []>} : vector<2x512xf32>, vector<512x128xf32>, vector<2x128xf32> -> vector<2x128xf32>
    %c0_33 = arith.constant 0 : index
    %c0_34 = arith.constant 0 : index
    %62 = vector.load %arg7[%c0_33, %c0_34] : memref<1x128xf32, #tpu.memory_space<vmem>>, vector<1x128xf32>
    %63 = vector.broadcast %62 : vector<1x128xf32> to vector<2x128xf32>
    %64 = arith.addf %61, %63 : vector<2x128xf32>
    %c0_35 = arith.constant 0 : index
    %c0_36 = arith.constant 0 : index
    %65 = vector.load %arg8[%c0_35, %c0_36] : memref<2x128xf32, #tpu.memory_space<vmem>>, vector<2x128xf32>
    tpu.vector_store %arg8[%c0_35, %c0_36], %64 {strides = array<i32>} : memref<2x128xf32, #tpu.memory_space<vmem>>, vector<2x128xf32>,
    return
  }
  func.func @transform_0(%arg0: i32) -> (i32, i32, i32) {
    %c0_i32 = arith.constant 0 : i32
    %c0_i32_0 = arith.constant 0 : i32
    %c0_i32_1 = arith.constant 0 : i32
    return %arg0, %c0_i32, %c0_i32_0 : i32, i32, i32
  }
  func.func @transform_1(%arg0: i32) -> (i32, i32) {
    %c0_i32 = arith.constant 0 : i32
    %c0_i32_0 = arith.constant 0 : i32
    return %arg0, %c0_i32 : i32, i32
  }
  func.func @transform_2(%arg0: i32) -> (i32, i32) {
    %c0_i32 = arith.constant 0 : i32
    %c0_i32_0 = arith.constant 0 : i32
    return %arg0, %c0_i32 : i32, i32
  }
  func.func @transform_3(%arg0: i32) -> (i32, i32) {
    %c0_i32 = arith.constant 0 : i32
    %c0_i32_0 = arith.constant 0 : i32
    %c0_i32_1 = arith.constant 0 : i32
    return %c0_i32, %c0_i32_0 : i32, i32
  }
  func.func @transform_4(%arg0: i32) -> (i32, i32) {
    %c0_i32 = arith.constant 0 : i32
    %c0_i32_0 = arith.constant 0 : i32
    %c0_i32_1 = arith.constant 0 : i32
    return %c0_i32, %c0_i32_0 : i32, i32
  }
  func.func @transform_5(%arg0: i32) -> (i32, i32) {
    %c0_i32 = arith.constant 0 : i32
    %c0_i32_0 = arith.constant 0 : i32
    %c0_i32_1 = arith.constant 0 : i32
    return %c0_i32, %c0_i32_0 : i32, i32
  }
  func.func @transform_6(%arg0: i32) -> (i32, i32) {
    %c0_i32 = arith.constant 0 : i32
    %c0_i32_0 = arith.constant 0 : i32
    %c0_i32_1 = arith.constant 0 : i32
    return %c0_i32, %c0_i32_0 : i32, i32
  }
  func.func @transform_7(%arg0: i32) -> (i32, i32) {
    %c0_i32 = arith.constant 0 : i32
    %c0_i32_0 = arith.constant 0 : i32
    return %arg0, %c0_i32 : i32, i32
  }
}

</mosaic_0001>

<llo_original>
// kernel: tpu_custom_call.1
$region0: #{tpu_custom_call.1}
  #allocation0 [shape = 'u32[]', space=smem, size = 0x4, offset = 0x4, fixed_abs, tag = 'smem constant byte address 0x4 - core index']
  #allocation1 [shape = 'u32[144,128]{1,0:T(1,128)}', space=vmem, size = 0x12000, scoped, tag = 'internal scratch']
  %s0 = inlined_call_operand.hbm [shape: f32[2,8,32], index: 0, kind: input, shape index: {}]
  %s1 = inlined_call_operand.vmem [shape: f32[2,8], index: 1, kind: input, shape index: {}]
  %s2 = inlined_call_operand.hbm [shape: f32[2,8], index: 2, kind: input, shape index: {}]
  %s3 = inlined_call_operand.hbm [shape: f32[96,512], index: 3, kind: input, shape index: {}]
  %s4 = inlined_call_operand.vmem [shape: f32[1,512], index: 4, kind: input, shape index: {}]
  %s5 = inlined_call_operand.hbm [shape: f32[512,128], index: 5, kind: input, shape index: {}]
  %s6 = inlined_call_operand.vmem [shape: f32[1,128], index: 6, kind: input, shape index: {}]
  %s7 = inlined_call_operand.hbm [shape: f32[2,128], index: 7, kind: output, shape index: {}]
  %s8 = sld [smem:[#allocation0]]
  $region54: #{tpu_custom_call.1} parent=0
    _
  %s10 = ssub.s32 1, %s8
  %s11 = scalar_select 0, %s10, %s8
  $region1: #{tpu_custom_call.1} parent=0
    #allocation2 [shape = 'u8[8192]{0}', space=vmem, size = 0x2000, scoped, tag = 'input window, operand 0, single buffered']
    #allocation3 [shape = 's32[1]{0}', space=sflag, size = 0x4, scoped, tag = 'scoped memory for tpu_custom_call.1']
    #allocation4 [shape = 's32[1]{0}', space=sflag, size = 0x4, scoped, tag = 'scoped memory for tpu_custom_call.1']
    #allocation5 [shape = 'u8[1024]{0}', space=vmem, size = 0x400, scoped, tag = 'input window, operand 2, single buffered']
    #allocation6 [shape = 's32[1]{0}', space=sflag, size = 0x4, scoped, tag = 'scoped memory for tpu_custom_call.1']
    #allocation7 [shape = 'u8[196608]{0}', space=vmem, size = 0x30000, scoped, tag = 'input window, operand 3, single buffered']
    #allocation8 [shape = 'u8[262144]{0}', space=vmem, size = 0x40000, scoped, tag = 'input window, operand 5, single buffered']
    #allocation9 [shape = 's32[1]{0}', space=sflag, size = 0x4, scoped, tag = 'scoped memory for tpu_custom_call.1']
    #allocation10 [shape = 'u8[1024]{0}', space=vmem, size = 0x400, scoped, tag = 'output window, operand 0, single buffered']
    %12 = vsyncpa [#allocation3], 0
    %13 = vsyncpa [#allocation6], 0
    %14 = vsyncpa [#allocation9], 0
    %15 = vsyncpa [#allocation4], 0
    // Predicated region
    $region2: #{tpu_custom_call.1} parent=1 // pred_check
      _
    $region3: #{tpu_custom_call.1} parent=1 // pred_check_branch
      %17 = sbr.rel (0) target = $region5
    $region4: #{tpu_custom_call.1} parent=1 // pred_region
      %s19 = ssub.s32 256, 256
      %20 = vsyncadd [#allocation3], %s19
      %s21 = sshll.u32 [#allocation2], 4
      %s22 = int_to_ptr.vmem [resolvable:$true] %s21
      %27 = dma.hbm_to_vmem [thread:$0]  %s0, 256, %s22, [#allocation3], 128, 128, 8
    $region5: #{tpu_custom_call.1} parent=1 // pred_fallthru
      _
    // Predicated region
    $region6: #{tpu_custom_call.1} parent=1 // pred_check
      _
    $region7: #{tpu_custom_call.1} parent=1 // pred_check_branch
      %29 = sbr.rel (0) target = $region9
    $region8: #{tpu_custom_call.1} parent=1 // pred_region
      _
    $region9: #{tpu_custom_call.1} parent=1 // pred_fallthru
      _
    // Predicated region
    $region10: #{tpu_custom_call.1} parent=1 // pred_check
      _
    $region11: #{tpu_custom_call.1} parent=1 // pred_check_branch
      %31 = sbr.rel (0) target = $region13
    $region12: #{tpu_custom_call.1} parent=1 // pred_region
      %s33 = ssub.s32 32, 32
      %34 = vsyncadd [#allocation6], %s33
      %s36 = sshll.u32 [#allocation5], 4
      %s37 = int_to_ptr.vmem [resolvable:$true] %s36
      %39 = dma.hbm_to_vmem [thread:$0]  %s2, 32, %s37, [#allocation6]
    $region13: #{tpu_custom_call.1} parent=1 // pred_fallthru
      _
    // Predicated region
    $region14: #{tpu_custom_call.1} parent=1 // pred_check
      _
    $region15: #{tpu_custom_call.1} parent=1 // pred_check_branch
      %41 = sbr.rel (0) target = $region17
    $region16: #{tpu_custom_call.1} parent=1 // pred_region
      %s43 = ssub.s32 6144, 6144
      %44 = vsyncadd [#allocation6], %s43
      %s45 = sshll.u32 [#allocation7], 4
      %s46 = int_to_ptr.vmem [resolvable:$true] %s45
      %51 = dma.hbm_to_vmem [thread:$0]  %s3, 6144, %s46, [#allocation6], 512, 512, 32
    $region17: #{tpu_custom_call.1} parent=1 // pred_fallthru
      _
    // Predicated region
    $region18: #{tpu_custom_call.1} parent=1 // pred_check
      _
    $region19: #{tpu_custom_call.1} parent=1 // pred_check_branch
      %53 = sbr.rel (0) target = $region21
    $region20: #{tpu_custom_call.1} parent=1 // pred_region
      _
    $region21: #{tpu_custom_call.1} parent=1 // pred_fallthru
      _
    // Predicated region
    $region22: #{tpu_custom_call.1} parent=1 // pred_check
      _
    $region23: #{tpu_custom_call.1} parent=1 // pred_check_branch
      %55 = sbr.rel (0) target = $region25
    $region24: #{tpu_custom_call.1} parent=1 // pred_region
      %s57 = ssub.s32 8192, 8192
      %58 = vsyncadd [#allocation9], %s57
      %s59 = sshll.u32 [#allocation8], 4
      %s60 = int_to_ptr.vmem [resolvable:$true] %s59
      %65 = dma.hbm_to_vmem [thread:$0]  %s5, 8192, %s60, [#allocation9], 128, 128, 8
    $region25: #{tpu_custom_call.1} parent=1 // pred_fallthru
      _
    // Predicated region
    $region26: #{tpu_custom_call.1} parent=1 // pred_check
      _
    $region27: #{tpu_custom_call.1} parent=1 // pred_check_branch
      %67 = sbr.rel (0) target = $region29
    $region28: #{tpu_custom_call.1} parent=1 // pred_region
      _
    $region29: #{tpu_custom_call.1} parent=1 // pred_fallthru
      _
    // Predicated region
    $region30: #{tpu_custom_call.1} parent=1 // pred_check
      _
    $region31: #{tpu_custom_call.1} parent=1 // pred_check_branch
      %69 = sbr.rel (0) target = $region33
    $region32: #{tpu_custom_call.1} parent=1 // pred_region
      %70 = dma.done [#allocation3], 256
    $region33: #{tpu_custom_call.1} parent=1 // pred_fallthru
      _
    // Predicated region
    $region34: #{tpu_custom_call.1} parent=1 // pred_check
      _
    $region35: #{tpu_custom_call.1} parent=1 // pred_check_branch
      %72 = sbr.rel (0) target = $region37
    $region36: #{tpu_custom_call.1} parent=1 // pred_region
      %73 = dma.done [#allocation6], 32
    $region37: #{tpu_custom_call.1} parent=1 // pred_fallthru
      _
    // Predicated region
    $region38: #{tpu_custom_call.1} parent=1 // pred_check
      _
    $region39: #{tpu_custom_call.1} parent=1 // pred_check_branch
      %75 = sbr.rel (0) target = $region41
    $region40: #{tpu_custom_call.1} parent=1 // pred_region
      %76 = dma.done [#allocation6], 6144
    $region41: #{tpu_custom_call.1} parent=1 // pred_fallthru
      _
    // Predicated region
    $region42: #{tpu_custom_call.1} parent=1 // pred_check
      _
    $region43: #{tpu_custom_call.1} parent=1 // pred_check_branch
      %78 = sbr.rel (0) target = $region45
    $region44: #{tpu_custom_call.1} parent=1 // pred_region
      %79 = dma.done [#allocation9], 8192
    $region45: #{tpu_custom_call.1} parent=1 // pred_fallthru
      _
    %v80 = vld [vmem:[#allocation2] sm:$0xff]
    %v81 = vld [vmem:[#allocation2 + $0x8] sm:$0xff]
    %v82 = vld [vmem:[%s1] sm:$0x3]
    %v83 = vld [vmem:[#allocation5] sm:$0x3]
    %v84 = vsub.f32 %v83, 1.0
    %v85 = vand.u32 2147483647, %v84
    %vm86 = vcmp.lt.f32.partialorder %v85, 0.5
    %v87 = vsel %vm86, %v82, 0.0
    %v88 = vsub.f32 %v83, 2.0
    %v89 = vand.u32 2147483647, %v88
    %vm90 = vcmp.lt.f32.partialorder %v89, 0.5
    %v91 = vsel %vm90, %v82, 0.0
    %v92 = vlaneseq
    %v93 = vshrl.u32 %v92, 7
    %v94 = vsub.s32 0, %v93
    %v95 = vrot.slane %v82, %v94
    %97 = vbcast.lane.b32.xlu0 %v95, 256
    %v98 = vpop.permute.xlu0 %97
    %v99 = vlaneseq
    %v100 = vshrl.u32 %v99, 7
    %v101 = vsub.s32 1, %v100
    %v102 = vrot.slane %v82, %v101
    %104 = vbcast.lane.b32.xlu0 %v102, 256
    %v105 = vpop.permute.xlu0 %104
    %v106 = vmul.f32 %v80, %v98
    %v107 = vmul.f32 %v81, %v105
    %vm108 = vcmask 261120
    %v109 = vsel %vm108, %v106, 0.0
    %v110 = vrot.slane %v109, 4
    %v111 = vadd.f32 %v109, %v110
    %v112 = vrot.slane %v111, 2
    %v113 = vadd.f32 %v111, %v112
    %v114 = vrot.slane %v113, 1
    %v115 = vadd.f32 %v113, %v114
    %v116 = vsel %vm108, %v107, 0.0
    %v117 = vrot.slane %v116, 4
    %v118 = vadd.f32 %v116, %v117
    %v119 = vrot.slane %v118, 2
    %v120 = vadd.f32 %v118, %v119
    %v121 = vrot.slane %v120, 1
    %v122 = vadd.f32 %v120, %v121
    %vm123 = vcmask 58368
    %v124 = vsel %vm123, %v82, 0.0
    %125 = vadd.xlane.f32.xlu0 %v124
    %v126 = vpop.xlane.xlu0 %125
    %v127 = vmax.f32 %v126, 1.0
    %v129 = vrot.slane %v127, 1
    %v132 = vrcp.pop %v127
    %v133 = vmul.f32 %v115, %v132
    %v134 = vrcp.pop %v129
    %v135 = vmul.f32 %v122, %v134
    %v136 = vlaneseq
    %v137 = vshrl.u32 %v136, 7
    %v138 = vsub.s32 0, %v137
    %v139 = vrot.slane %v87, %v138
    %141 = vbcast.lane.b32.xlu0 %v139, 256
    %v142 = vpop.permute.xlu0 %141
    %v143 = vlaneseq
    %v144 = vshrl.u32 %v143, 7
    %v145 = vsub.s32 1, %v144
    %v146 = vrot.slane %v87, %v145
    %148 = vbcast.lane.b32.xlu0 %v146, 256
    %v149 = vpop.permute.xlu0 %148
    %v150 = vmul.f32 %v80, %v142
    %v151 = vmul.f32 %v81, %v149
    %v152 = vsel %vm108, %v150, 0.0
    %v153 = vrot.slane %v152, 4
    %v154 = vadd.f32 %v152, %v153
    %v155 = vrot.slane %v154, 2
    %v156 = vadd.f32 %v154, %v155
    %v157 = vrot.slane %v156, 1
    %v158 = vadd.f32 %v156, %v157
    %v159 = vsel %vm108, %v151, 0.0
    %v160 = vrot.slane %v159, 4
    %v161 = vadd.f32 %v159, %v160
    %v162 = vrot.slane %v161, 2
    %v163 = vadd.f32 %v161, %v162
    %v164 = vrot.slane %v163, 1
    %v165 = vadd.f32 %v163, %v164
    %v166 = vsel %vm123, %v87, 0.0
    %167 = vadd.xlane.f32.xlu0 %v166
    %v168 = vpop.xlane.xlu0 %167
    %v169 = vmax.f32 %v168, 1.0
    %v171 = vrot.slane %v169, 1
    %v174 = vrcp.pop %v169
    %v175 = vmul.f32 %v158, %v174
    %v176 = vrcp.pop %v171
    %v177 = vmul.f32 %v165, %v176
    %v178 = vlaneseq
    %v179 = vshrl.u32 %v178, 7
    %v180 = vsub.s32 0, %v179
    %v181 = vrot.slane %v91, %v180
    %183 = vbcast.lane.b32.xlu0 %v181, 256
    %v184 = vpop.permute.xlu0 %183
    %v185 = vlaneseq
    %v186 = vshrl.u32 %v185, 7
    %v187 = vsub.s32 1, %v186
    %v188 = vrot.slane %v91, %v187
    %190 = vbcast.lane.b32.xlu0 %v188, 256
    %v191 = vpop.permute.xlu0 %190
    %v192 = vmul.f32 %v80, %v184
    %v193 = vmul.f32 %v81, %v191
    %v194 = vsel %vm108, %v192, 0.0
    %v195 = vrot.slane %v194, 4
    %v196 = vadd.f32 %v194, %v195
    %v197 = vrot.slane %v196, 2
    %v198 = vadd.f32 %v196, %v197
    %v199 = vrot.slane %v198, 1
    %v200 = vadd.f32 %v198, %v199
    %v201 = vsel %vm108, %v193, 0.0
    %v202 = vrot.slane %v201, 4
    %v203 = vadd.f32 %v201, %v202
    %v204 = vrot.slane %v203, 2
    %v205 = vadd.f32 %v203, %v204
    %v206 = vrot.slane %v205, 1
    %v207 = vadd.f32 %v205, %v206
    %v208 = vsel %vm123, %v91, 0.0
    %209 = vadd.xlane.f32.xlu0 %v208
    %v210 = vpop.xlane.xlu0 %209
    %v211 = vmax.f32 %v210, 1.0
    %v213 = vrot.slane %v211, 1
    %v216 = vrcp.pop %v211
    %v217 = vmul.f32 %v200, %v216
    %v218 = vrcp.pop %v213
    %v219 = vmul.f32 %v207, %v218
    %v220 = vld [vmem:[#allocation7] sm:$0xff]
    %v221 = vld [vmem:[#allocation7 + $0x8] sm:$0xff]
    %v222 = vld [vmem:[#allocation7 + $0x10] sm:$0xff]
    %v223 = vld [vmem:[#allocation7 + $0x18] sm:$0xff]
    %v224 = vld [vmem:[#allocation7 + $0x20] sm:$0xff]
    %v225 = vld [vmem:[#allocation7 + $0x28] sm:$0xff]
    %v226 = vld [vmem:[#allocation7 + $0x30] sm:$0xff]
    %v227 = vld [vmem:[#allocation7 + $0x38] sm:$0xff]
    %v228 = vld [vmem:[#allocation7 + $0x40] sm:$0xff]
    %v229 = vld [vmem:[#allocation7 + $0x48] sm:$0xff]
    %v230 = vld [vmem:[#allocation7 + $0x50] sm:$0xff]
    %v231 = vld [vmem:[#allocation7 + $0x58] sm:$0xff]
    %v232 = vld [vmem:[#allocation7 + $0x60] sm:$0xff]
    %v233 = vld [vmem:[#allocation7 + $0x68] sm:$0xff]
    %v234 = vld [vmem:[#allocation7 + $0x70] sm:$0xff]
    %v235 = vld [vmem:[#allocation7 + $0x78] sm:$0xff]
    %v236 = vld [vmem:[#allocation7 + $0x80] sm:$0xff]
    %v237 = vld [vmem:[#allocation7 + $0x88] sm:$0xff]
    %v238 = vld [vmem:[#allocation7 + $0x90] sm:$0xff]
    %v239 = vld [vmem:[#allocation7 + $0x98] sm:$0xff]
    %v240 = vld [vmem:[#allocation7 + $0xa0] sm:$0xff]
    %v241 = vld [vmem:[#allocation7 + $0xa8] sm:$0xff]
    %v242 = vld [vmem:[#allocation7 + $0xb0] sm:$0xff]
    %v243 = vld [vmem:[#allocation7 + $0xb8] sm:$0xff]
    %v244 = vld [vmem:[#allocation7 + $0xc0] sm:$0xff]
    %v245 = vld [vmem:[#allocation7 + $0xc8] sm:$0xff]
    %v246 = vld [vmem:[#allocation7 + $0xd0] sm:$0xff]
    %v247 = vld [vmem:[#allocation7 + $0xd8] sm:$0xff]
    %v248 = vld [vmem:[#allocation7 + $0xe0] sm:$0xff]
    %v249 = vld [vmem:[#allocation7 + $0xe8] sm:$0xff]
    %v250 = vld [vmem:[#allocation7 + $0xf0] sm:$0xff]
    %v251 = vld [vmem:[#allocation7 + $0xf8] sm:$0xff]
    %v254 = vrot.slane %v177, 7
    %vm255 = vcmask 1041409
    %v256 = vsel %vm255, %v254, %v175
    %v257 = vsel %vm108, %v256, 0
    %259 = vmatprep.subr.mxu0 %v237
    %260 = vmatpush1.msra.mxu0 %v236
    %261 = vmatprep.subr.mxu0 %v241
    %262 = vmatpush1.msra.mxu0 %v240
    %263 = vmatprep.subr.mxu0 %v245
    %264 = vmatpush1.msra.mxu0 %v244
    %265 = vmatprep.subr.mxu0 %v249
    %266 = vmatpush1.msra.mxu0 %v248
    %267 = vmatprep.subr.mxu0 0.0
    %268 = vmatpush1.msra.mxu0 0.0
    %269 = vmatprep.subr.mxu0 0.0
    %270 = vmatpush1.msra.mxu0 0.0
    %271 = vmatprep.subr.mxu0 0.0
    %272 = vmatpush1.msra.mxu0 0.0
    %273 = vmatprep.subr.mxu0 0.0
    %274 = vmatpush1.msra.mxu0 0.0
    %275 = vmatprep.subr.mxu0 0.0
    %276 = vmatpush1.msra.mxu0 0.0
    %277 = vmatprep.subr.mxu0 0.0
    %278 = vmatpush1.msra.mxu0 0.0
    %279 = vmatprep.subr.mxu0 0.0
    %280 = vmatpush1.msra.mxu0 0.0
    %281 = vmatprep.subr.mxu0 0.0
    %282 = vmatpush1.msra.mxu0 0.0
    %283 = vmatprep.subr.mxu0 0.0
    %284 = vmatpush1.msra.mxu0 0.0
    %285 = vmatprep.subr.mxu0 0.0
    %286 = vmatpush1.msra.mxu0 0.0
    %287 = vmatprep.subr.mxu0 0.0
    %288 = vmatpush1.msra.mxu0 0.0
    %289 = vmatprep.subr.mxu0 0.0
    %290 = vmatpush1.msra.mxu0 0.0
    %291 = vmatprep.subr.mxu0 0.0
    %292 = vmatpush1.msra.mxu0 0.0
    %293 = vmatprep.subr.mxu0 0.0
    %294 = vmatpush1.msra.mxu0 0.0
    %295 = vmatprep.subr.mxu0 0.0
    %296 = vmatpush1.msra.mxu0 0.0
    %297 = vmatprep.subr.mxu0 0.0
    %298 = vmatpush1.msra.mxu0 0.0
    %299 = vmatprep.subr.mxu0 0.0
    %300 = vmatpush1.msra.mxu0 0.0
    %301 = vmatprep.subr.mxu0 0.0
    %302 = vmatpush1.msra.mxu0 0.0
    %303 = vmatprep.subr.mxu0 0.0
    %304 = vmatpush1.msra.mxu0 0.0
    %305 = vmatprep.subr.mxu0 0.0
    %306 = vmatpush1.msra.mxu0 0.0
    %307 = vmatprep.subr.mxu0 0.0
    %308 = vmatpush1.msra.mxu0 0.0
    %309 = vmatprep.subr.mxu0 0.0
    %310 = vmatpush1.msra.mxu0 0.0
    %311 = vmatprep.subr.mxu0 0.0
    %312 = vmatpush1.msra.mxu0 0.0
    %313 = vmatprep.subr.mxu0 0.0
    %314 = vmatpush1.msra.mxu0 0.0
    %315 = vmatprep.subr.mxu0 0.0
    %316 = vmatpush1.msra.mxu0 0.0
    %317 = vmatprep.subr.mxu0 0.0
    %318 = vmatpush1.msra.mxu0 0.0
    %319 = vmatprep.subr.mxu0 0.0
    %320 = vmatpush1.msra.mxu0 0.0
    %321 = vmatprep.subr.mxu0 0.0
    %322 = vmatpush1.msra.mxu0 0.0
    %323 = vmatprep.mubr.f32.mxu0 0.0
    %324 = vmatmul.mubr.f32.gmra.mrb[0].mxu0 %v257
    %v325 = vpop.f32.mrb[0].mxu0
    %v326 = vadd.f32 0.0, %v325
    %v327 = vpop.f32.mrb[0].mxu0
    %v328 = vadd.f32 0.0, %v327
    %329 = vdwg.mxu0
    %330 = vmatprep.subr.mxu0 %v239
    %331 = vmatpush1.msra.mxu0 %v238
    %332 = vmatprep.subr.mxu0 %v243
    %333 = vmatpush1.msra.mxu0 %v242
    %334 = vmatprep.subr.mxu0 %v247
    %335 = vmatpush1.msra.mxu0 %v246
    %336 = vmatprep.subr.mxu0 %v251
    %337 = vmatpush1.msra.mxu0 %v250
    %338 = vmatprep.subr.mxu0 0.0
    %339 = vmatpush1.msra.mxu0 0.0
    %340 = vmatprep.subr.mxu0 0.0
    %341 = vmatpush1.msra.mxu0 0.0
    %342 = vmatprep.subr.mxu0 0.0
    %343 = vmatpush1.msra.mxu0 0.0
    %344 = vmatprep.subr.mxu0 0.0
    %345 = vmatpush1.msra.mxu0 0.0
    %346 = vmatprep.subr.mxu0 0.0
    %347 = vmatpush1.msra.mxu0 0.0
    %348 = vmatprep.subr.mxu0 0.0
    %349 = vmatpush1.msra.mxu0 0.0
    %350 = vmatprep.subr.mxu0 0.0
    %351 = vmatpush1.msra.mxu0 0.0
    %352 = vmatprep.subr.mxu0 0.0
    %353 = vmatpush1.msra.mxu0 0.0
    %354 = vmatprep.subr.mxu0 0.0
    %355 = vmatpush1.msra.mxu0 0.0
    %356 = vmatprep.subr.mxu0 0.0
    %357 = vmatpush1.msra.mxu0 0.0
    %358 = vmatprep.subr.mxu0 0.0
    %359 = vmatpush1.msra.mxu0 0.0
    %360 = vmatprep.subr.mxu0 0.0
    %361 = vmatpush1.msra.mxu0 0.0
    %362 = vmatprep.subr.mxu0 0.0
    %363 = vmatpush1.msra.mxu0 0.0
    %364 = vmatprep.subr.mxu0 0.0
    %365 = vmatpush1.msra.mxu0 0.0
    %366 = vmatprep.subr.mxu0 0.0
    %367 = vmatpush1.msra.mxu0 0.0
    %368 = vmatprep.subr.mxu0 0.0
    %369 = vmatpush1.msra.mxu0 0.0
    %370 = vmatprep.subr.mxu0 0.0
    %371 = vmatpush1.msra.mxu0 0.0
    %372 = vmatprep.subr.mxu0 0.0
    %373 = vmatpush1.msra.mxu0 0.0
    %374 = vmatprep.subr.mxu0 0.0
    %375 = vmatpush1.msra.mxu0 0.0
    %376 = vmatprep.subr.mxu0 0.0
    %377 = vmatpush1.msra.mxu0 0.0
    %378 = vmatprep.subr.mxu0 0.0
    %379 = vmatpush1.msra.mxu0 0.0
    %380 = vmatprep.subr.mxu0 0.0
    %381 = vmatpush1.msra.mxu0 0.0
    %382 = vmatprep.subr.mxu0 0.0
    %383 = vmatpush1.msra.mxu0 0.0
    %384 = vmatprep.subr.mxu0 0.0
    %385 = vmatpush1.msra.mxu0 0.0
    %386 = vmatprep.subr.mxu0 0.0
    %387 = vmatpush1.msra.mxu0 0.0
    %388 = vmatprep.subr.mxu0 0.0
    %389 = vmatpush1.msra.mxu0 0.0
    %390 = vmatprep.subr.mxu0 0.0
    %391 = vmatpush1.msra.mxu0 0.0
    %392 = vmatprep.subr.mxu0 0.0
    %393 = vmatpush1.msra.mxu0 0.0
    %394 = vmatprep.mubr.f32.mxu0 0.0
    %395 = vmatmul.mubr.f32.gmra.mrb[0].mxu0 %v257
    %v396 = vpop.f32.mrb[0].mxu0
    %v397 = vadd.f32 0.0, %v396
    %v398 = vpop.f32.mrb[0].mxu0
    %v399 = vadd.f32 0.0, %v398
    %400 = vdwg.mxu0
    %v403 = vrot.slane %v135, 7
    %v404 = vsel %vm255, %v403, %v133
    %v405 = vsel %vm108, %v404, 0
    %407 = vmatprep.subr.mxu0 %v221
    %408 = vmatpush1.msra.mxu0 %v220
    %409 = vmatprep.subr.mxu0 %v225
    %410 = vmatpush1.msra.mxu0 %v224
    %411 = vmatprep.subr.mxu0 %v229
    %412 = vmatpush1.msra.mxu0 %v228
    %413 = vmatprep.subr.mxu0 %v233
    %414 = vmatpush1.msra.mxu0 %v232
    %415 = vmatprep.subr.mxu0 0.0
    %416 = vmatpush1.msra.mxu0 0.0
    %417 = vmatprep.subr.mxu0 0.0
    %418 = vmatpush1.msra.mxu0 0.0
    %419 = vmatprep.subr.mxu0 0.0
    %420 = vmatpush1.msra.mxu0 0.0
    %421 = vmatprep.subr.mxu0 0.0
    %422 = vmatpush1.msra.mxu0 0.0
    %423 = vmatprep.subr.mxu0 0.0
    %424 = vmatpush1.msra.mxu0 0.0
    %425 = vmatprep.subr.mxu0 0.0
    %426 = vmatpush1.msra.mxu0 0.0
    %427 = vmatprep.subr.mxu0 0.0
    %428 = vmatpush1.msra.mxu0 0.0
    %429 = vmatprep.subr.mxu0 0.0
    %430 = vmatpush1.msra.mxu0 0.0
    %431 = vmatprep.subr.mxu0 0.0
    %432 = vmatpush1.msra.mxu0 0.0
    %433 = vmatprep.subr.mxu0 0.0
    %434 = vmatpush1.msra.mxu0 0.0
    %435 = vmatprep.subr.mxu0 0.0
    %436 = vmatpush1.msra.mxu0 0.0
    %437 = vmatprep.subr.mxu0 0.0
    %438 = vmatpush1.msra.mxu0 0.0
    %439 = vmatprep.subr.mxu0 0.0
    %440 = vmatpush1.msra.mxu0 0.0
    %441 = vmatprep.subr.mxu0 0.0
    %442 = vmatpush1.msra.mxu0 0.0
    %443 = vmatprep.subr.mxu0 0.0
    %444 = vmatpush1.msra.mxu0 0.0
    %445 = vmatprep.subr.mxu0 0.0
    %446 = vmatpush1.msra.mxu0 0.0
    %447 = vmatprep.subr.mxu0 0.0
    %448 = vmatpush1.msra.mxu0 0.0
    %449 = vmatprep.subr.mxu0 0.0
    %450 = vmatpush1.msra.mxu0 0.0
    %451 = vmatprep.subr.mxu0 0.0
    %452 = vmatpush1.msra.mxu0 0.0
    %453 = vmatprep.subr.mxu0 0.0
    %454 = vmatpush1.msra.mxu0 0.0
    %455 = vmatprep.subr.mxu0 0.0
    %456 = vmatpush1.msra.mxu0 0.0
    %457 = vmatprep.subr.mxu0 0.0
    %458 = vmatpush1.msra.mxu0 0.0
    %459 = vmatprep.subr.mxu0 0.0
    %460 = vmatpush1.msra.mxu0 0.0
    %461 = vmatprep.subr.mxu0 0.0
    %462 = vmatpush1.msra.mxu0 0.0
    %463 = vmatprep.subr.mxu0 0.0
    %464 = vmatpush1.msra.mxu0 0.0
    %465 = vmatprep.subr.mxu0 0.0
    %466 = vmatpush1.msra.mxu0 0.0
    %467 = vmatprep.subr.mxu0 0.0
    %468 = vmatpush1.msra.mxu0 0.0
    %469 = vmatprep.subr.mxu0 0.0
    %470 = vmatpush1.msra.mxu0 0.0
    %471 = vmatprep.mubr.f32.mxu0 0.0
    %472 = vmatmul.mubr.f32.gmra.mrb[0].mxu0 %v405
    %v473 = vpop.f32.mrb[0].mxu0
    %v474 = vadd.f32 %v326, %v473
    %v475 = vpop.f32.mrb[0].mxu0
    %v476 = vadd.f32 %v328, %v475
    %477 = vdwg.mxu0
    %478 = vmatprep.subr.mxu0 %v223
    %479 = vmatpush1.msra.mxu0 %v222
    %480 = vmatprep.subr.mxu0 %v227
    %481 = vmatpush1.msra.mxu0 %v226
    %482 = vmatprep.subr.mxu0 %v231
    %483 = vmatpush1.msra.mxu0 %v230
    %484 = vmatprep.subr.mxu0 %v235
    %485 = vmatpush1.msra.mxu0 %v234
    %486 = vmatprep.subr.mxu0 0.0
    %487 = vmatpush1.msra.mxu0 0.0
    %488 = vmatprep.subr.mxu0 0.0
    %489 = vmatpush1.msra.mxu0 0.0
    %490 = vmatprep.subr.mxu0 0.0
    %491 = vmatpush1.msra.mxu0 0.0
    %492 = vmatprep.subr.mxu0 0.0
    %493 = vmatpush1.msra.mxu0 0.0
    %494 = vmatprep.subr.mxu0 0.0
    %495 = vmatpush1.msra.mxu0 0.0
    %496 = vmatprep.subr.mxu0 0.0
    %497 = vmatpush1.msra.mxu0 0.0
    %498 = vmatprep.subr.mxu0 0.0
    %499 = vmatpush1.msra.mxu0 0.0
    %500 = vmatprep.subr.mxu0 0.0
    %501 = vmatpush1.msra.mxu0 0.0
    %502 = vmatprep.subr.mxu0 0.0
    %503 = vmatpush1.msra.mxu0 0.0
    %504 = vmatprep.subr.mxu0 0.0
    %505 = vmatpush1.msra.mxu0 0.0
    %506 = vmatprep.subr.mxu0 0.0
    %507 = vmatpush1.msra.mxu0 0.0
    %508 = vmatprep.subr.mxu0 0.0
    %509 = vmatpush1.msra.mxu0 0.0
    %510 = vmatprep.subr.mxu0 0.0
    %511 = vmatpush1.msra.mxu0 0.0
    %512 = vmatprep.subr.mxu0 0.0
    %513 = vmatpush1.msra.mxu0 0.0
    %514 = vmatprep.subr.mxu0 0.0
    %515 = vmatpush1.msra.mxu0 0.0
    %516 = vmatprep.subr.mxu0 0.0
    %517 = vmatpush1.msra.mxu0 0.0
    %518 = vmatprep.subr.mxu0 0.0
    %519 = vmatpush1.msra.mxu0 0.0
    %520 = vmatprep.subr.mxu0 0.0
    %521 = vmatpush1.msra.mxu0 0.0
    %522 = vmatprep.subr.mxu0 0.0
    %523 = vmatpush1.msra.mxu0 0.0
    %524 = vmatprep.subr.mxu0 0.0
    %525 = vmatpush1.msra.mxu0 0.0
    %526 = vmatprep.subr.mxu0 0.0
    %527 = vmatpush1.msra.mxu0 0.0
    %528 = vmatprep.subr.mxu0 0.0
    %529 = vmatpush1.msra.mxu0 0.0
    %530 = vmatprep.subr.mxu0 0.0
    %531 = vmatpush1.msra.mxu0 0.0
    %532 = vmatprep.subr.mxu0 0.0
    %533 = vmatpush1.msra.mxu0 0.0
    %534 = vmatprep.subr.mxu0 0.0
    %535 = vmatpush1.msra.mxu0 0.0
    %536 = vmatprep.subr.mxu0 0.0
    %537 = vmatpush1.msra.mxu0 0.0
    %538 = vmatprep.subr.mxu0 0.0
    %539 = vmatpush1.msra.mxu0 0.0
    %540 = vmatprep.subr.mxu0 0.0
    %541 = vmatpush1.msra.mxu0 0.0
    %542 = vmatprep.mubr.f32.mxu0 0.0
    %543 = vmatmul.mubr.f32.gmra.mrb[0].mxu0 %v405
    %v544 = vpop.f32.mrb[0].mxu0
    %v545 = vadd.f32 %v397, %v544
    %v546 = vpop.f32.mrb[0].mxu0
    %v547 = vadd.f32 %v399, %v546
    %548 = vdwg.mxu0
    %v549 = vld [vmem:[#allocation7 + $0x100] sm:$0xff]
    %v550 = vld [vmem:[#allocation7 + $0x108] sm:$0xff]
    %v551 = vld [vmem:[#allocation7 + $0x110] sm:$0xff]
    %v552 = vld [vmem:[#allocation7 + $0x118] sm:$0xff]
    %v553 = vld [vmem:[#allocation7 + $0x120] sm:$0xff]
    %v554 = vld [vmem:[#allocation7 + $0x128] sm:$0xff]
    %v555 = vld [vmem:[#allocation7 + $0x130] sm:$0xff]
    %v556 = vld [vmem:[#allocation7 + $0x138] sm:$0xff]
    %v557 = vld [vmem:[#allocation7 + $0x140] sm:$0xff]
    %v558 = vld [vmem:[#allocation7 + $0x148] sm:$0xff]
    %v559 = vld [vmem:[#allocation7 + $0x150] sm:$0xff]
    %v560 = vld [vmem:[#allocation7 + $0x158] sm:$0xff]
    %v561 = vld [vmem:[#allocation7 + $0x160] sm:$0xff]
    %v562 = vld [vmem:[#allocation7 + $0x168] sm:$0xff]
    %v563 = vld [vmem:[#allocation7 + $0x170] sm:$0xff]
    %v564 = vld [vmem:[#allocation7 + $0x178] sm:$0xff]
    %v567 = vrot.slane %v219, 7
    %v568 = vsel %vm255, %v567, %v217
    %v569 = vsel %vm108, %v568, 0
    %571 = vmatprep.subr.mxu0 %v550
    %572 = vmatpush1.msra.mxu0 %v549
    %573 = vmatprep.subr.mxu0 %v554
    %574 = vmatpush1.msra.mxu0 %v553
    %575 = vmatprep.subr.mxu0 %v558
    %576 = vmatpush1.msra.mxu0 %v557
    %577 = vmatprep.subr.mxu0 %v562
    %578 = vmatpush1.msra.mxu0 %v561
    %579 = vmatprep.subr.mxu0 0.0
    %580 = vmatpush1.msra.mxu0 0.0
    %581 = vmatprep.subr.mxu0 0.0
    %582 = vmatpush1.msra.mxu0 0.0
    %583 = vmatprep.subr.mxu0 0.0
    %584 = vmatpush1.msra.mxu0 0.0
    %585 = vmatprep.subr.mxu0 0.0
    %586 = vmatpush1.msra.mxu0 0.0
    %587 = vmatprep.subr.mxu0 0.0
    %588 = vmatpush1.msra.mxu0 0.0
    %589 = vmatprep.subr.mxu0 0.0
    %590 = vmatpush1.msra.mxu0 0.0
    %591 = vmatprep.subr.mxu0 0.0
    %592 = vmatpush1.msra.mxu0 0.0
    %593 = vmatprep.subr.mxu0 0.0
    %594 = vmatpush1.msra.mxu0 0.0
    %595 = vmatprep.subr.mxu0 0.0
    %596 = vmatpush1.msra.mxu0 0.0
    %597 = vmatprep.subr.mxu0 0.0
    %598 = vmatpush1.msra.mxu0 0.0
    %599 = vmatprep.subr.mxu0 0.0
    %600 = vmatpush1.msra.mxu0 0.0
    %601 = vmatprep.subr.mxu0 0.0
    %602 = vmatpush1.msra.mxu0 0.0
    %603 = vmatprep.subr.mxu0 0.0
    %604 = vmatpush1.msra.mxu0 0.0
    %605 = vmatprep.subr.mxu0 0.0
    %606 = vmatpush1.msra.mxu0 0.0
    %607 = vmatprep.subr.mxu0 0.0
    %608 = vmatpush1.msra.mxu0 0.0
    %609 = vmatprep.subr.mxu0 0.0
    %610 = vmatpush1.msra.mxu0 0.0
    %611 = vmatprep.subr.mxu0 0.0
    %612 = vmatpush1.msra.mxu0 0.0
    %613 = vmatprep.subr.mxu0 0.0
    %614 = vmatpush1.msra.mxu0 0.0
    %615 = vmatprep.subr.mxu0 0.0
    %616 = vmatpush1.msra.mxu0 0.0
    %617 = vmatprep.subr.mxu0 0.0
    %618 = vmatpush1.msra.mxu0 0.0
    %619 = vmatprep.subr.mxu0 0.0
    %620 = vmatpush1.msra.mxu0 0.0
    %621 = vmatprep.subr.mxu0 0.0
    %622 = vmatpush1.msra.mxu0 0.0
    %623 = vmatprep.subr.mxu0 0.0
    %624 = vmatpush1.msra.mxu0 0.0
    %625 = vmatprep.subr.mxu0 0.0
    %626 = vmatpush1.msra.mxu0 0.0
    %627 = vmatprep.subr.mxu0 0.0
    %628 = vmatpush1.msra.mxu0 0.0
    %629 = vmatprep.subr.mxu0 0.0
    %630 = vmatpush1.msra.mxu0 0.0
    %631 = vmatprep.subr.mxu0 0.0
    %632 = vmatpush1.msra.mxu0 0.0
    %633 = vmatprep.subr.mxu0 0.0
    %634 = vmatpush1.msra.mxu0 0.0
    %635 = vmatprep.mubr.f32.mxu0 0.0
    %636 = vmatmul.mubr.f32.gmra.mrb[0].mxu0 %v569
    %v637 = vpop.f32.mrb[0].mxu0
    %v638 = vadd.f32 0.0, %v637
    %v639 = vpop.f32.mrb[0].mxu0
    %v640 = vadd.f32 0.0, %v639
    %641 = vdwg.mxu0
    %642 = vmatprep.subr.mxu0 %v552
    %643 = vmatpush1.msra.mxu0 %v551
    %644 = vmatprep.subr.mxu0 %v556
    %645 = vmatpush1.msra.mxu0 %v555
    %646 = vmatprep.subr.mxu0 %v560
    %647 = vmatpush1.msra.mxu0 %v559
    %648 = vmatprep.subr.mxu0 %v564
    %649 = vmatpush1.msra.mxu0 %v563
    %650 = vmatprep.subr.mxu0 0.0
    %651 = vmatpush1.msra.mxu0 0.0
    %652 = vmatprep.subr.mxu0 0.0
    %653 = vmatpush1.msra.mxu0 0.0
    %654 = vmatprep.subr.mxu0 0.0
    %655 = vmatpush1.msra.mxu0 0.0
    %656 = vmatprep.subr.mxu0 0.0
    %657 = vmatpush1.msra.mxu0 0.0
    %658 = vmatprep.subr.mxu0 0.0
    %659 = vmatpush1.msra.mxu0 0.0
    %660 = vmatprep.subr.mxu0 0.0
    %661 = vmatpush1.msra.mxu0 0.0
    %662 = vmatprep.subr.mxu0 0.0
    %663 = vmatpush1.msra.mxu0 0.0
    %664 = vmatprep.subr.mxu0 0.0
    %665 = vmatpush1.msra.mxu0 0.0
    %666 = vmatprep.subr.mxu0 0.0
    %667 = vmatpush1.msra.mxu0 0.0
    %668 = vmatprep.subr.mxu0 0.0
    %669 = vmatpush1.msra.mxu0 0.0
    %670 = vmatprep.subr.mxu0 0.0
    %671 = vmatpush1.msra.mxu0 0.0
    %672 = vmatprep.subr.mxu0 0.0
    %673 = vmatpush1.msra.mxu0 0.0
    %674 = vmatprep.subr.mxu0 0.0
    %675 = vmatpush1.msra.mxu0 0.0
    %676 = vmatprep.subr.mxu0 0.0
    %677 = vmatpush1.msra.mxu0 0.0
    %678 = vmatprep.subr.mxu0 0.0
    %679 = vmatpush1.msra.mxu0 0.0
    %680 = vmatprep.subr.mxu0 0.0
    %681 = vmatpush1.msra.mxu0 0.0
    %682 = vmatprep.subr.mxu0 0.0
    %683 = vmatpush1.msra.mxu0 0.0
    %684 = vmatprep.subr.mxu0 0.0
    %685 = vmatpush1.msra.mxu0 0.0
    %686 = vmatprep.subr.mxu0 0.0
    %687 = vmatpush1.msra.mxu0 0.0
    %688 = vmatprep.subr.mxu0 0.0
    %689 = vmatpush1.msra.mxu0 0.0
    %690 = vmatprep.subr.mxu0 0.0
    %691 = vmatpush1.msra.mxu0 0.0
    %692 = vmatprep.subr.mxu0 0.0
    %693 = vmatpush1.msra.mxu0 0.0
    %694 = vmatprep.subr.mxu0 0.0
    %695 = vmatpush1.msra.mxu0 0.0
    %696 = vmatprep.subr.mxu0 0.0
    %697 = vmatpush1.msra.mxu0 0.0
    %698 = vmatprep.subr.mxu0 0.0
    %699 = vmatpush1.msra.mxu0 0.0
    %700 = vmatprep.subr.mxu0 0.0
    %701 = vmatpush1.msra.mxu0 0.0
    %702 = vmatprep.subr.mxu0 0.0
    %703 = vmatpush1.msra.mxu0 0.0
    %704 = vmatprep.subr.mxu0 0.0
    %705 = vmatpush1.msra.mxu0 0.0
    %706 = vmatprep.mubr.f32.mxu0 0.0
    %707 = vmatmul.mubr.f32.gmra.mrb[0].mxu0 %v569
    %v708 = vpop.f32.mrb[0].mxu0
    %v709 = vadd.f32 0.0, %v708
    %v710 = vpop.f32.mrb[0].mxu0
    %v711 = vadd.f32 0.0, %v710
    %712 = vdwg.mxu0
    %v713 = vadd.f32 %v474, %v638
    %v714 = vadd.f32 %v476, %v640
    %v715 = vadd.f32 %v545, %v709
    %v716 = vadd.f32 %v547, %v711
    %v717 = vld [vmem:[%s4] sm:$0xf]
    %v719 = vlaneseq
    %v720 = vshrl.u32 %v719, 7
    %v721 = vsub.s32 0, %v720
    %v722 = vrot.slane %v717, %v721
    %v723 = vlaneseq
    %v724 = vshrl.u32 %v723, 7
    %v725 = vsub.s32 1, %v724
    %v726 = vrot.slane %v717, %v725
    %v727 = vlaneseq
    %v728 = vshrl.u32 %v727, 7
    %v729 = vsub.s32 2, %v728
    %v730 = vrot.slane %v717, %v729
    %v731 = vlaneseq
    %v732 = vshrl.u32 %v731, 7
    %v733 = vsub.s32 3, %v732
    %v734 = vrot.slane %v717, %v733
    %v739 = vadd.f32 %v713, %v722
    %v740 = vadd.f32 %v714, %v726
    %v741 = vadd.f32 %v715, %v730
    %v742 = vadd.f32 %v716, %v734
    %v743 = vmax.f32 %v739, 0.0
    %v744 = vmax.f32 %v740, 0.0
    %v745 = vmax.f32 %v741, 0.0
    %v746 = vmax.f32 %v742, 0.0
    %v747 = vld [vmem:[#allocation8] sm:$0xff]
    %v748 = vld [vmem:[#allocation8 + $0x8] sm:$0xff]
    %v749 = vld [vmem:[#allocation8 + $0x10] sm:$0xff]
    %v750 = vld [vmem:[#allocation8 + $0x18] sm:$0xff]
    %v751 = vld [vmem:[#allocation8 + $0x20] sm:$0xff]
    %v752 = vld [vmem:[#allocation8 + $0x28] sm:$0xff]
    %v753 = vld [vmem:[#allocation8 + $0x30] sm:$0xff]
    %v754 = vld [vmem:[#allocation8 + $0x38] sm:$0xff]
    %v755 = vld [vmem:[#allocation8 + $0x40] sm:$0xff]
    %v756 = vld [vmem:[#allocation8 + $0x48] sm:$0xff]
    %v757 = vld [vmem:[#allocation8 + $0x50] sm:$0xff]
    %v758 = vld [vmem:[#allocation8 + $0x58] sm:$0xff]
    %v759 = vld [vmem:[#allocation8 + $0x60] sm:$0xff]
    %v760 = vld [vmem:[#allocation8 + $0x68] sm:$0xff]
    %v761 = vld [vmem:[#allocation8 + $0x70] sm:$0xff]
    %v762 = vld [vmem:[#allocation8 + $0x78] sm:$0xff]
    %v763 = vld [vmem:[#allocation8 + $0x80] sm:$0xff]
    %v764 = vld [vmem:[#allocation8 + $0x88] sm:$0xff]
    %v765 = vld [vmem:[#allocation8 + $0x90] sm:$0xff]
    %v766 = vld [vmem:[#allocation8 + $0x98] sm:$0xff]
    %v767 = vld [vmem:[#allocation8 + $0xa0] sm:$0xff]
    %v768 = vld [vmem:[#allocation8 + $0xa8] sm:$0xff]
    %v769 = vld [vmem:[#allocation8 + $0xb0] sm:$0xff]
    %v770 = vld [vmem:[#allocation8 + $0xb8] sm:$0xff]
    %v771 = vld [vmem:[#allocation8 + $0xc0] sm:$0xff]
    %v772 = vld [vmem:[#allocation8 + $0xc8] sm:$0xff]
    %v773 = vld [vmem:[#allocation8 + $0xd0] sm:$0xff]
    %v774 = vld [vmem:[#allocation8 + $0xd8] sm:$0xff]
    %v775 = vld [vmem:[#allocation8 + $0xe0] sm:$0xff]
    %v776 = vld [vmem:[#allocation8 + $0xe8] sm:$0xff]
    %v777 = vld [vmem:[#allocation8 + $0xf0] sm:$0xff]
    %v778 = vld [vmem:[#allocation8 + $0xf8] sm:$0xff]
    %v779 = vld [vmem:[#allocation8 + $0x100] sm:$0xff]
    %v780 = vld [vmem:[#allocation8 + $0x108] sm:$0xff]
    %v781 = vld [vmem:[#allocation8 + $0x110] sm:$0xff]
    %v782 = vld [vmem:[#allocation8 + $0x118] sm:$0xff]
    %v783 = vld [vmem:[#allocation8 + $0x120] sm:$0xff]
    %v784 = vld [vmem:[#allocation8 + $0x128] sm:$0xff]
    %v785 = vld [vmem:[#allocation8 + $0x130] sm:$0xff]
    %v786 = vld [vmem:[#allocation8 + $0x138] sm:$0xff]
    %v787 = vld [vmem:[#allocation8 + $0x140] sm:$0xff]
    %v788 = vld [vmem:[#allocation8 + $0x148] sm:$0xff]
    %v789 = vld [vmem:[#allocation8 + $0x150] sm:$0xff]
    %v790 = vld [vmem:[#allocation8 + $0x158] sm:$0xff]
    %v791 = vld [vmem:[#allocation8 + $0x160] sm:$0xff]
    %v792 = vld [vmem:[#allocation8 + $0x168] sm:$0xff]
    %v793 = vld [vmem:[#allocation8 + $0x170] sm:$0xff]
    %v794 = vld [vmem:[#allocation8 + $0x178] sm:$0xff]
    %v795 = vld [vmem:[#allocation8 + $0x180] sm:$0xff]
    %v796 = vld [vmem:[#allocation8 + $0x188] sm:$0xff]
    %v797 = vld [vmem:[#allocation8 + $0x190] sm:$0xff]
    %v798 = vld [vmem:[#allocation8 + $0x198] sm:$0xff]
    %v799 = vld [vmem:[#allocation8 + $0x1a0] sm:$0xff]
    %v800 = vld [vmem:[#allocation8 + $0x1a8] sm:$0xff]
    %v801 = vld [vmem:[#allocation8 + $0x1b0] sm:$0xff]
    %v802 = vld [vmem:[#allocation8 + $0x1b8] sm:$0xff]
    %v803 = vld [vmem:[#allocation8 + $0x1c0] sm:$0xff]
    %v804 = vld [vmem:[#allocation8 + $0x1c8] sm:$0xff]
    %v805 = vld [vmem:[#allocation8 + $0x1d0] sm:$0xff]
    %v806 = vld [vmem:[#allocation8 + $0x1d8] sm:$0xff]
    %v807 = vld [vmem:[#allocation8 + $0x1e0] sm:$0xff]
    %v808 = vld [vmem:[#allocation8 + $0x1e8] sm:$0xff]
    %v809 = vld [vmem:[#allocation8 + $0x1f0] sm:$0xff]
    %v810 = vld [vmem:[#allocation8 + $0x1f8] sm:$0xff]
    %v811 = vld [vmem:[%s6] sm:$0x1]
    %v813 = vlaneseq
    %v814 = vshrl.u32 %v813, 7
    %v815 = vsub.s32 0, %v814
    %v816 = vrot.slane %v811, %v815
    %818 = vmatprep.subr.mxu0 0.0
    %819 = vmatpush1.msra.mxu0 %v747
    %820 = vmatprep.subr.mxu0 0.0
    %821 = vmatpush1.msra.mxu0 %v748
    %822 = vmatprep.subr.mxu0 0.0
    %823 = vmatpush1.msra.mxu0 %v749
    %824 = vmatprep.subr.mxu0 0.0
    %825 = vmatpush1.msra.mxu0 %v750
    %826 = vmatprep.subr.mxu0 0.0
    %827 = vmatpush1.msra.mxu0 %v751
    %828 = vmatprep.subr.mxu0 0.0
    %829 = vmatpush1.msra.mxu0 %v752
    %830 = vmatprep.subr.mxu0 0.0
    %831 = vmatpush1.msra.mxu0 %v753
    %832 = vmatprep.subr.mxu0 0.0
    %833 = vmatpush1.msra.mxu0 %v754
    %834 = vmatprep.subr.mxu0 0.0
    %835 = vmatpush1.msra.mxu0 %v755
    %836 = vmatprep.subr.mxu0 0.0
    %837 = vmatpush1.msra.mxu0 %v756
    %838 = vmatprep.subr.mxu0 0.0
    %839 = vmatpush1.msra.mxu0 %v757
    %840 = vmatprep.subr.mxu0 0.0
    %841 = vmatpush1.msra.mxu0 %v758
    %842 = vmatprep.subr.mxu0 0.0
    %843 = vmatpush1.msra.mxu0 %v759
    %844 = vmatprep.subr.mxu0 0.0
    %845 = vmatpush1.msra.mxu0 %v760
    %846 = vmatprep.subr.mxu0 0.0
    %847 = vmatpush1.msra.mxu0 %v761
    %848 = vmatprep.subr.mxu0 0.0
    %849 = vmatpush1.msra.mxu0 %v762
    %850 = vmatprep.subr.mxu0 0.0
    %851 = vmatpush1.msra.mxu0 %v763
    %852 = vmatprep.subr.mxu0 0.0
    %853 = vmatpush1.msra.mxu0 %v764
    %854 = vmatprep.subr.mxu0 0.0
    %855 = vmatpush1.msra.mxu0 %v765
    %856 = vmatprep.subr.mxu0 0.0
    %857 = vmatpush1.msra.mxu0 %v766
    %858 = vmatprep.subr.mxu0 0.0
    %859 = vmatpush1.msra.mxu0 %v767
    %860 = vmatprep.subr.mxu0 0.0
    %861 = vmatpush1.msra.mxu0 %v768
    %862 = vmatprep.subr.mxu0 0.0
    %863 = vmatpush1.msra.mxu0 %v769
    %864 = vmatprep.subr.mxu0 0.0
    %865 = vmatpush1.msra.mxu0 %v770
    %866 = vmatprep.subr.mxu0 0.0
    %867 = vmatpush1.msra.mxu0 %v771
    %868 = vmatprep.subr.mxu0 0.0
    %869 = vmatpush1.msra.mxu0 %v772
    %870 = vmatprep.subr.mxu0 0.0
    %871 = vmatpush1.msra.mxu0 %v773
    %872 = vmatprep.subr.mxu0 0.0
    %873 = vmatpush1.msra.mxu0 %v774
    %874 = vmatprep.subr.mxu0 0.0
    %875 = vmatpush1.msra.mxu0 %v775
    %876 = vmatprep.subr.mxu0 0.0
    %877 = vmatpush1.msra.mxu0 %v776
    %878 = vmatprep.subr.mxu0 0.0
    %879 = vmatpush1.msra.mxu0 %v777
    %880 = vmatprep.subr.mxu0 0.0
    %881 = vmatpush1.msra.mxu0 %v778
    %882 = vmatprep.mubr.f32.mxu0 %v744
    %883 = vmatmul.mubr.f32.gmra.mrb[0].mxu0 %v743
    %v884 = vpop.f32.mrb[0].mxu0
    %v885 = vadd.f32 %v816, %v884
    %v886 = vpop.f32.mrb[0].mxu0
    %887 = vdwg.mxu0
    %888 = vmatprep.subr.mxu0 0.0
    %889 = vmatpush1.msra.mxu0 %v779
    %890 = vmatprep.subr.mxu0 0.0
    %891 = vmatpush1.msra.mxu0 %v780
    %892 = vmatprep.subr.mxu0 0.0
    %893 = vmatpush1.msra.mxu0 %v781
    %894 = vmatprep.subr.mxu0 0.0
    %895 = vmatpush1.msra.mxu0 %v782
    %896 = vmatprep.subr.mxu0 0.0
    %897 = vmatpush1.msra.mxu0 %v783
    %898 = vmatprep.subr.mxu0 0.0
    %899 = vmatpush1.msra.mxu0 %v784
    %900 = vmatprep.subr.mxu0 0.0
    %901 = vmatpush1.msra.mxu0 %v785
    %902 = vmatprep.subr.mxu0 0.0
    %903 = vmatpush1.msra.mxu0 %v786
    %904 = vmatprep.subr.mxu0 0.0
    %905 = vmatpush1.msra.mxu0 %v787
    %906 = vmatprep.subr.mxu0 0.0
    %907 = vmatpush1.msra.mxu0 %v788
    %908 = vmatprep.subr.mxu0 0.0
    %909 = vmatpush1.msra.mxu0 %v789
    %910 = vmatprep.subr.mxu0 0.0
    %911 = vmatpush1.msra.mxu0 %v790
    %912 = vmatprep.subr.mxu0 0.0
    %913 = vmatpush1.msra.mxu0 %v791
    %914 = vmatprep.subr.mxu0 0.0
    %915 = vmatpush1.msra.mxu0 %v792
    %916 = vmatprep.subr.mxu0 0.0
    %917 = vmatpush1.msra.mxu0 %v793
    %918 = vmatprep.subr.mxu0 0.0
    %919 = vmatpush1.msra.mxu0 %v794
    %920 = vmatprep.subr.mxu0 0.0
    %921 = vmatpush1.msra.mxu0 %v795
    %922 = vmatprep.subr.mxu0 0.0
    %923 = vmatpush1.msra.mxu0 %v796
    %924 = vmatprep.subr.mxu0 0.0
    %925 = vmatpush1.msra.mxu0 %v797
    %926 = vmatprep.subr.mxu0 0.0
    %927 = vmatpush1.msra.mxu0 %v798
    %928 = vmatprep.subr.mxu0 0.0
    %929 = vmatpush1.msra.mxu0 %v799
    %930 = vmatprep.subr.mxu0 0.0
    %931 = vmatpush1.msra.mxu0 %v800
    %932 = vmatprep.subr.mxu0 0.0
    %933 = vmatpush1.msra.mxu0 %v801
    %934 = vmatprep.subr.mxu0 0.0
    %935 = vmatpush1.msra.mxu0 %v802
    %936 = vmatprep.subr.mxu0 0.0
    %937 = vmatpush1.msra.mxu0 %v803
    %938 = vmatprep.subr.mxu0 0.0
    %939 = vmatpush1.msra.mxu0 %v804
    %940 = vmatprep.subr.mxu0 0.0
    %941 = vmatpush1.msra.mxu0 %v805
    %942 = vmatprep.subr.mxu0 0.0
    %943 = vmatpush1.msra.mxu0 %v806
    %944 = vmatprep.subr.mxu0 0.0
    %945 = vmatpush1.msra.mxu0 %v807
    %946 = vmatprep.subr.mxu0 0.0
    %947 = vmatpush1.msra.mxu0 %v808
    %948 = vmatprep.subr.mxu0 0.0
    %949 = vmatpush1.msra.mxu0 %v809
    %950 = vmatprep.subr.mxu0 0.0
    %951 = vmatpush1.msra.mxu0 %v810
    %952 = vmatprep.mubr.f32.mxu0 %v746
    %953 = vmatmul.mubr.f32.gmra.mrb[0].mxu0 %v745
    %v954 = vpop.f32.mrb[0].mxu0
    %v955 = vadd.f32 %v885, %v954
    %v956 = vpop.f32.mrb[0].mxu0
    %957 = vdwg.mxu0
    %958 = vst [vmem:[#allocation10] sm:$0x3] %v955
    // Predicated region
    $region46: #{tpu_custom_call.1} parent=1 // pred_check
      _
    $region47: #{tpu_custom_call.1} parent=1 // pred_check_branch
      %960 = sbr.rel (0) target = $region49
    $region48: #{tpu_custom_call.1} parent=1 // pred_region
      %s962 = ssub.s32 32, 32
      %963 = vsyncadd [#allocation4], %s962
      %s965 = sshll.u32 [#allocation10], 4
      %s966 = int_to_ptr.vmem [resolvable:$true] %s965
      %968 = dma.vmem_to_hbm [thread:$0]  %s966, 32, %s7, [#allocation4]
    $region49: #{tpu_custom_call.1} parent=1 // pred_fallthru
      _
    // Predicated region
    $region50: #{tpu_custom_call.1} parent=1 // pred_check
      _
    $region51: #{tpu_custom_call.1} parent=1 // pred_check_branch
      %970 = sbr.rel (0) target = $region53
    $region52: #{tpu_custom_call.1} parent=1 // pred_region
      %971 = dma.done [#allocation4], 32
    $region53: #{tpu_custom_call.1} parent=1 // pred_fallthru
      _
    %972 = vsyncpa [#allocation3], 1
    %973 = vsyncpa [#allocation6], 1
    %974 = vsyncpa [#allocation9], 1
    %975 = vsyncpa [#allocation4], 1

</llo_original>
